<compile_context>
chip_gen: v5e
topology: v5e:2x2
jax: 0.10.0
libtpu: 0.0.40
codegen_flags: <defaults>
</compile_context>

<pallas_src>
import functools
import math

import jax
import jax.numpy as jnp
from jax.experimental import pallas as pl
from jax.experimental.pallas import tpu as pltpu

_LANE_CANDIDATES = (4096, 2048, 1024, 512, 256, 128)
_MIN_PALLAS_ELEMS = 1024                # below this, a fused XLA op wins


def _lsqplus_act_kernel(s_ref, beta_ref, x_ref, o_ref, *, qn, qp):
    # s / beta are (1,)-shaped f32 scalars living in SMEM.
    alpha = s_ref[0]
    beta = beta_ref[0]
    inv_s = 1.0 / alpha                          # scalar; hidden under block DMA
    x = x_ref[...].astype(jnp.float32)           # upcast in vregs (bf16 etc.)
    q = jnp.clip((x - beta) * inv_s, qn, qp)     # multiply, not divide
    # torch.round and jnp.round both round half-to-even.
    o_ref[...] = (jnp.round(q) * alpha + beta).astype(o_ref.dtype)


def _reference(activation, s, beta, qn, qp):
    """Pure-JAX forward (same math as PyTorch ALSQPlus.forward)."""
    x = activation.astype(jnp.float32)
    q = jnp.clip((x - beta[0]) / s[0], qn, qp)
    return (jnp.round(q) * s[0] + beta[0]).astype(activation.dtype)


def _pick_lane(n):
    for cand in _LANE_CANDIDATES:
        if n % cand == 0:
            return cand
    return 0


@functools.lru_cache(maxsize=None)
def _tpu_chip_traits():
    """Return (num_tensorcores, target_block_bytes, vmem_limit_bytes)."""
    try:
        kind = jax.devices()[0].device_kind.lower()
    except Exception:  # pragma: no cover - defensive
        kind = ""
    if "v7" in kind:                               # 2 TC, 64 MiB physical VMEM
        return 2, 6 << 20, 40 << 20
    if "v6" in kind:                               # 1 TC, 128 MiB VMEM
        return 1, 6 << 20, 48 << 20
    if "v5e" in kind or "v5 lite" in kind or "v5lite" in kind:
        return 1, 3 << 20, 24 << 20                # 1 TC, 16 MiB scoped default
    if "v5p" in kind or "v5" in kind or "v4" in kind:
        return 2, 4 << 20, 32 << 20                # megacore (2 TC)
    return 1, 2 << 20, None                        # unknown: conservative


def _choose_block_rows(rows, bytes_per_row, sub_mult, target_bytes, num_cores):
    """Block row count: multiple of sub_mult (or == rows), sized near
    target_bytes, preferring an exact divisor of `rows` (uniform blocks, no
    masked tail) and an even number of blocks on 2-TensorCore chips."""
    if rows <= sub_mult:
        return rows
    target_rows = max(sub_mult,
                      (target_bytes // bytes_per_row) // sub_mult * sub_mult)
    min_blocks = pl.cdiv(rows, target_rows)
    if num_cores >= 2:
        min_blocks = max(min_blocks, 2)
        if min_blocks % 2:
            min_blocks += 1                        # keep both cores balanced
    if min_blocks <= 1:
        return rows                                # single full-extent block
    if rows % sub_mult == 0:
        units = rows // sub_mult
        step = 2 if num_cores >= 2 else 1
        nblk = min_blocks
        limit = min(units, 4 * min_blocks)
        while nblk <= limit:
            if units % nblk == 0:                  # exact divisor: no ragged tail
                return (units // nblk) * sub_mult
            nblk += step
    # No clean divisor: ragged last block (Pallas masks the partial store).
    br = pl.cdiv(rows, min_blocks)
    return min(rows, max(sub_mult, pl.cdiv(br, sub_mult) * sub_mult))


@functools.partial(jax.jit, static_argnums=(3, 4))
def _lsqplus_quantize(activation, s, beta, qn, qp):
    orig_shape = activation.shape
    dtype = activation.dtype
    n = activation.size
    s = s.astype(jnp.float32)
    beta = beta.astype(jnp.float32)

    lane = _pick_lane(n)
    if n < _MIN_PALLAS_ELEMS or lane == 0:
        # Tiny or lane-unfriendly sizes: a single fused XLA elementwise op is
        # already memory-optimal; the pallas_call launch would dominate.
        return _reference(activation, s, beta, qn, qp)

    num_cores, target_bytes, vmem_limit = _tpu_chip_traits()

    rows = n // lane
    x2d = activation.reshape(rows, lane)   # metadata-only under jit

    itemsize = jnp.dtype(dtype).itemsize
    # Sublane multiple for packed dtypes: 8 (f32), 16 (bf16/f16), 32 (int8).
    sub_mult = 8 * max(1, 4 // itemsize)
    block_rows = _choose_block_rows(rows, lane * itemsize, sub_mult,
                                    target_bytes, num_cores)
    grid = (pl.cdiv(rows, block_rows),)

    kernel = functools.partial(_lsqplus_act_kernel, qn=float(qn), qp=float(qp))

    out2d = pl.pallas_call(
        kernel,
        out_shape=jax.ShapeDtypeStruct((rows, lane), dtype),
        grid=grid,
        in_specs=[
            pl.BlockSpec(memory_space=pltpu.SMEM),              # s    (1,)
            pl.BlockSpec(memory_space=pltpu.SMEM),              # beta (1,)
            pl.BlockSpec((block_rows, lane), lambda i: (i, 0)),
        ],
        out_specs=pl.BlockSpec((block_rows, lane), lambda i: (i, 0)),
        compiler_params=pltpu.CompilerParams(
            dimension_semantics=("parallel",),
            vmem_limit_bytes=vmem_limit,
        ),
        cost_estimate=pl.CostEstimate(
            flops=7 * n,
            transcendentals=0,
            bytes_accessed=2 * n * itemsize + 8,
        ),
    )(s, beta, x2d)

    return out2d.reshape(orig_shape)


class LSQPlusActivationQuantizer:
    """JAX/Pallas re-implementation of the PyTorch module (forward only)."""

    def __init__(self, a_bits, all_positive=False, batch_init=20):
        self.a_bits = a_bits
        self.all_positive = all_positive
        self.batch_init = batch_init
        if self.all_positive:
            self.Qn = 0
            self.Qp = 2 ** self.a_bits - 1
        else:
            self.Qn = -(2 ** (self.a_bits - 1))
            self.Qp = 2 ** (self.a_bits - 1) - 1
        # Deterministic parameter init, matching the PyTorch __init__.
        self.s = jnp.ones((1,), dtype=jnp.float32)
        self.beta = jnp.array([-1e-09], dtype=jnp.float32)
        self.init_state = 0
        self.g = None

    def __call__(self, activation):
        if self.a_bits == 32:
            return activation
        if self.a_bits == 1:
            raise AssertionError("Binary quantization is not supported")
        if self.init_state == 0:
            # As in the reference: g only feeds the backward pass.
            # TODO(synk): backward (ALSQPlus grad_alpha/grad_beta STE) is not
            # implemented; forward-only kernel.
            self.g = 1.0 / math.sqrt(activation.size * self.Qp)
            self.init_state += 1
        return _lsqplus_quantize(
            activation, self.s, self.beta, float(self.Qn), float(self.Qp)
        )


if __name__ == "__main__":
    key = jax.random.PRNGKey(0)
    k1, k2 = jax.random.split(key)

    quantizer = LSQPlusActivationQuantizer(a_bits=8, all_positive=False)

    # Small NCHW activation (single-block Pallas path, f32).
    x_small = jax.random.normal(k1, (2, 4, 16, 16), dtype=jnp.float32) * 3.0
    q_small = jax.block_until_ready(quantizer(x_small))
    ref_small = _reference(x_small, quantizer.s, quantizer.beta,
                           float(quantizer.Qn), float(quantizer.Qp))
    assert q_small.shape == x_small.shape and q_small.dtype == x_small.dtype
    assert jnp.allclose(q_small, ref_small, atol=1e-5, rtol=1e-5)

    # Medium bf16 activation (native-dtype streaming path; multi-block on 2-TC chips).
    x_med = (jax.random.normal(k2, (2, 16, 64, 64), dtype=jnp.float32) * 3.0
             ).astype(jnp.bfloat16)
    q_med = jax.block_until_ready(quantizer(x_med))
    ref_med = _reference(x_med, quantizer.s, quantizer.beta,
                         float(quantizer.Qn), float(quantizer.Qp))
    assert q_med.shape == x_med.shape and q_med.dtype == x_med.dtype
    assert jnp.allclose(q_med.astype(jnp.float32), ref_med.astype(jnp.float32),
                        atol=1e-2, rtol=1e-2)

    # a_bits == 32 passthrough and the all_positive Qn/Qp branch.
    passthrough = LSQPlusActivationQuantizer(a_bits=32)(x_small)
    assert jnp.array_equal(passthrough, x_small)
    q_pos = jax.block_until_ready(
        LSQPlusActivationQuantizer(a_bits=4, all_positive=True)(x_small))
    ref_pos = _reference(x_small, jnp.ones((1,), jnp.float32),
                         jnp.array([-1e-09], jnp.float32), 0.0, 15.0)
    assert jnp.allclose(q_pos, ref_pos, atol=1e-5, rtol=1e-5)

    print("KERNEL_OK")
</pallas_src>

<mosaic_0001>
module attributes {stable_mosaic.version = 11 : i64} {
  func.func @_lsqplus_act_kernel(%arg0: i32, %arg1: memref<1xf32, #tpu.memory_space<smem>>, %arg2: memref<1xf32, #tpu.memory_space<smem>>, %arg3: memref<1x2048xf32, #tpu.memory_space<vmem>>, %arg4: memref<1x2048xf32, #tpu.memory_space<vmem>>) attributes {dimension_semantics = [#tpu.dimension_semantics<parallel>], iteration_bounds = array<i64: 1>, scalar_prefetch = 0 : i64, scratch_operands = 0 : i64, tpu.core_type = #tpu.core_type<tc>, window_params = [{transform_indices = @transform_0, window_bounds = array<i64: 1>}, {transform_indices = @transform_1, window_bounds = array<i64: 1>}, {transform_indices = @transform_2, window_bounds = array<i64: 1, 2048>}, {transform_indices = @transform_3, window_bounds = array<i64: 1, 2048>}]} {
    %c0 = arith.constant 0 : index
    %0 = memref.load %arg1[%c0] : memref<1xf32, #tpu.memory_space<smem>>
    %c0_0 = arith.constant 0 : index
    %1 = memref.load %arg2[%c0_0] : memref<1xf32, #tpu.memory_space<smem>>
    %cst = arith.constant 1.000000e+00 : f32
    %2 = arith.divf %cst, %0 : f32
    %c0_1 = arith.constant 0 : index
    %c0_2 = arith.constant 0 : index
    %3 = vector.load %arg3[%c0_1, %c0_2] : memref<1x2048xf32, #tpu.memory_space<vmem>>, vector<1x2048xf32>
    %4 = vector.broadcast %1 : f32 to vector<1x2048xf32>
    %5 = arith.subf %3, %4 : vector<1x2048xf32>
    %6 = vector.broadcast %2 : f32 to vector<1x2048xf32>
    %7 = arith.mulf %5, %6 : vector<1x2048xf32>
    %cst_3 = arith.constant -1.280000e+02 : f32
    %cst_4 = arith.constant 1.270000e+02 : f32
    %8 = vector.broadcast %cst_3 : f32 to vector<1x2048xf32>
    %9 = arith.maximumf %8, %7 : vector<1x2048xf32>
    %10 = vector.broadcast %cst_4 : f32 to vector<1x2048xf32>
    %11 = arith.minimumf %10, %9 : vector<1x2048xf32>
    %12 = math.roundeven %11 : vector<1x2048xf32>
    %13 = vector.broadcast %0 : f32 to vector<1x2048xf32>
    %14 = arith.mulf %12, %13 : vector<1x2048xf32>
    %15 = vector.broadcast %1 : f32 to vector<1x2048xf32>
    %16 = arith.addf %14, %15 : vector<1x2048xf32>
    %c0_5 = arith.constant 0 : index
    %c0_6 = arith.constant 0 : index
    %17 = vector.load %arg4[%c0_5, %c0_6] : memref<1x2048xf32, #tpu.memory_space<vmem>>, vector<1x2048xf32>
    tpu.vector_store %arg4[%c0_5, %c0_6], %16 {strides = array<i32>} : memref<1x2048xf32, #tpu.memory_space<vmem>>, vector<1x2048xf32>,
    return
  }
  func.func @transform_0(%arg0: i32) -> i32 {
    %c0_i32 = arith.constant 0 : i32
    %c0_i32_0 = arith.constant 0 : i32
    return %c0_i32 : i32
  }
  func.func @transform_1(%arg0: i32) -> i32 {
    %c0_i32 = arith.constant 0 : i32
    %c0_i32_0 = arith.constant 0 : i32
    return %c0_i32 : i32
  }
  func.func @transform_2(%arg0: i32) -> (i32, i32) {
    %c0_i32 = arith.constant 0 : i32
    %c0_i32_0 = arith.constant 0 : i32
    return %arg0, %c0_i32 : i32, i32
  }
  func.func @transform_3(%arg0: i32) -> (i32, i32) {
    %c0_i32 = arith.constant 0 : i32
    %c0_i32_0 = arith.constant 0 : i32
    return %arg0, %c0_i32 : i32, i32
  }
}

</mosaic_0001>

<llo_original>
// kernel: _lsqplus_quantize.1
$region0: #{_lsqplus_quantize.1}
  #allocation0 [shape = 'u32[]', space=smem, size = 0x4, offset = 0x4, fixed_abs, tag = 'smem constant byte address 0x4 - core index']
  #allocation1 [shape = 'u32[72,128]{1,0:T(1,128)}', space=vmem, size = 0x9000, scoped, tag = 'internal scratch']
  #allocation2 [shape = 'f32[1]{0:T(128)S(6)}', space=smem, size = 0x200, scoped, tag = 'scoped memory for _lsqplus_quantize.1']
  #allocation3 [shape = 'f32[1]{0:T(128)S(6)}', space=smem, size = 0x200, scoped, tag = 'scoped memory for _lsqplus_quantize.1']
  %s0 = inlined_call_operand.<no memory space> [shape: f32[1], index: 0, kind: input, shape index: {}]
  %s1 = inlined_call_operand.<no memory space> [shape: f32[1], index: 1, kind: input, shape index: {}]
  %s2 = inlined_call_operand.vmem [shape: f32[1,2048], index: 2, kind: input, shape index: {}]
  %s3 = inlined_call_operand.vmem [shape: f32[1,2048], index: 3, kind: output, shape index: {}]
  %s4 = sld [smem:[#allocation0]]
  $region22: #{_lsqplus_quantize.1} parent=0
    _
  %s6 = ssub.s32 1, %s4
  %s7 = scalar_select 0, %s6, %s4
  %8 = sst [smem:[#allocation2]] %s0
  %9 = sst [smem:[#allocation3]] %s1
  // Predicated region
  $region2: #{_lsqplus_quantize.1} parent=0 // pred_check
    _
  $region3: #{_lsqplus_quantize.1} parent=0 // pred_check_branch
    %11 = sbr.rel (0) target = $region5
  $region4: #{_lsqplus_quantize.1} parent=0 // pred_region
    _
  $region5: #{_lsqplus_quantize.1} parent=0 // pred_fallthru
    _
  // Predicated region
  $region6: #{_lsqplus_quantize.1} parent=0 // pred_check
    _
  $region7: #{_lsqplus_quantize.1} parent=0 // pred_check_branch
    %13 = sbr.rel (0) target = $region9
  $region8: #{_lsqplus_quantize.1} parent=0 // pred_region
    _
  $region9: #{_lsqplus_quantize.1} parent=0 // pred_fallthru
    _
  // Predicated region
  $region10: #{_lsqplus_quantize.1} parent=0 // pred_check
    _
  $region11: #{_lsqplus_quantize.1} parent=0 // pred_check_branch
    %15 = sbr.rel (0) target = $region13
  $region12: #{_lsqplus_quantize.1} parent=0 // pred_region
    _
  $region13: #{_lsqplus_quantize.1} parent=0 // pred_fallthru
    _
  %s16 = sld [smem:[#allocation2]]
  %s17 = sld [smem:[#allocation3]]
  %v18 = vstv %s16
  %v19 = vrcp.pop %v18
  %v20 = vmul.f32 %v18, %v19
  %v21 = vsub.f32 1.0, %v20
  %v22 = vmul.f32 %v19, %v21
  %v23 = vadd.f32 %v19, %v22
  %vm24 = vweird.f32 %v18
  %vm25 = vweird.f32 %v19
  %vm26 = vmor %vm24, %vm25
  %v27 = vsel %vm26, %v19, %v23
  %v28 = vand.u32 2147483647, %v18
  %vm29 = vcmp.eq.f32.partialorder %v28, 8.507059e+37
  %v30 = vand.u32 %v18, 2147483648
  %v31 = vor.u32 1.1754944e-38, %v30
  %v32 = vsel %vm29, %v31, %v27
  %s33 = vtos %v32
  %v34 = vld [vmem:[%s2] sm:$0xff]
  %v35 = vld [vmem:[%s2 + $0x8] sm:$0xff]
  %v36 = vstv %s17
  %v37 = vsub.f32 %v34, %v36
  %v38 = vsub.f32 %v35, %v36
  %v39 = vstv %s33
  %v40 = vmul.f32 %v37, %v39
  %v41 = vmul.f32 %v38, %v39
  %v42 = vmax.f32 %v40, -128.0
  %v43 = vmax.f32 %v41, -128.0
  %v44 = vmin.f32 %v42, 127.0
  %v45 = vmin.f32 %v43, 127.0
  %v46 = vround.ne.pseudo %v44
  %v47 = vround.ne.pseudo %v45
  %v48 = vstv %s16
  %v49 = vmul.f32 %v46, %v48
  %v50 = vmul.f32 %v47, %v48
  %v51 = vadd.f32 %v49, %v36
  %v52 = vadd.f32 %v50, %v36
  %53 = vst [vmem:[%s3] sm:$0xff] %v51
  %54 = vst [vmem:[%s3 + $0x8] sm:$0xff] %v52
  // Predicated region
  $region14: #{_lsqplus_quantize.1} parent=0 // pred_check
    _
  $region15: #{_lsqplus_quantize.1} parent=0 // pred_check_branch
    %56 = sbr.rel (0) target = $region17
  $region16: #{_lsqplus_quantize.1} parent=0 // pred_region
    _
  $region17: #{_lsqplus_quantize.1} parent=0 // pred_fallthru
    _
  // Predicated region
  $region18: #{_lsqplus_quantize.1} parent=0 // pred_check
    _
  $region19: #{_lsqplus_quantize.1} parent=0 // pred_check_branch
    %58 = sbr.rel (0) target = $region21
  $region20: #{_lsqplus_quantize.1} parent=0 // pred_region
    _
  $region21: #{_lsqplus_quantize.1} parent=0 // pred_fallthru
    _

</llo_original>
